<compile_context>
chip_gen: v7x
topology: tpu7x:2x2x1
jax: 0.10.0
libtpu: 0.0.40
codegen_flags: <defaults>
</compile_context>

<pallas_src>
import functools

import jax
import jax.numpy as jnp
from jax.experimental import pallas as pl
from jax.experimental.pallas import tpu as pltpu


def _round_up(x, m):
    return ((x + m - 1) // m) * m


def _linear_kernel(x_ref, w_ref, b_ref, o_ref, acc_ref):
    # x_ref: (tm, tk) bf16   w_ref: (tk, tn) bf16   b_ref: (1, tn) f32
    # o_ref: (tm, tn) out dtype   acc_ref: (tm, tn) f32 scratch
    k = pl.program_id(2)

    @pl.when(k == 0)
    def _():
        acc_ref[...] = jnp.zeros_like(acc_ref)

    # Contract over K directly (RHS already (K, N)): MXU push, f32 accumulate.
    acc_ref[...] += jnp.dot(
        x_ref[...], w_ref[...], preferred_element_type=jnp.float32
    )

    @pl.when(k == pl.num_programs(2) - 1)
    def _():
        # Bias added exactly once per output tile (not per reduction step).
        o_ref[...] = (acc_ref[...] + b_ref[...]).astype(o_ref.dtype)


@functools.partial(jax.jit, static_argnames=("tm", "tn", "tk"))
def neural_network_forward(x, weight, bias, *, tm=256, tn=256, tk=512):
    """Pallas implementation of NeuralNetwork.forward with model = Linear(in, out).

    x:      (batch, in_features)
    weight: (out_features, in_features)   -- PyTorch Linear layout
    bias:   (out_features,)
    returns (batch, out_features) in x.dtype
    """
    batch, in_features = x.shape
    out_features, in_features_w = weight.shape
    assert in_features == in_features_w

    out_dtype = x.dtype

    # ---- layout / dtype plumbing in the wrapper (not in the kernel) ------------
    # Pre-transpose weight to (K, N) so the kernel contracts K with no relayout.
    w_kn = weight.T
    # bf16 operands for the MXU; f32 accumulation inside the kernel.
    x_bf = x.astype(jnp.bfloat16)
    w_bf = w_kn.astype(jnp.bfloat16)
    b_f32 = bias.astype(jnp.float32)

    # Tile sizes clipped to the (padded) problem; keep (8, 128) alignment.
    tm = min(tm, _round_up(batch, 8))
    tn = min(tn, _round_up(out_features, 128))
    tk = min(tk, _round_up(in_features, 128))

    # Pad so every dim is a multiple of its tile (lane-dense output: N % 128 == 0).
    m_pad = _round_up(batch, tm)
    n_pad = _round_up(out_features, tn)
    k_pad = _round_up(in_features, tk)

    x_p = jnp.pad(x_bf, ((0, m_pad - batch), (0, k_pad - in_features)))
    w_p = jnp.pad(w_bf, ((0, k_pad - in_features), (0, n_pad - out_features)))
    b_p = jnp.pad(b_f32, (0, n_pad - out_features)).reshape(1, n_pad)

    grid = (m_pad // tm, n_pad // tn, k_pad // tk)

    cost = pl.CostEstimate(
        flops=2 * m_pad * n_pad * k_pad,
        transcendentals=0,
        bytes_accessed=(m_pad * k_pad * 2 + k_pad * n_pad * 2
                        + n_pad * 4 + m_pad * n_pad * jnp.dtype(out_dtype).itemsize),
    )

    out_padded = pl.pallas_call(
        _linear_kernel,
        out_shape=jax.ShapeDtypeStruct((m_pad, n_pad), out_dtype),
        grid_spec=pltpu.PrefetchScalarGridSpec(
            num_scalar_prefetch=0,
            grid=grid,
            in_specs=[
                pl.BlockSpec((tm, tk), lambda i, j, k: (i, k)),   # x tile
                pl.BlockSpec((tk, tn), lambda i, j, k: (k, j)),   # w tile (K, N)
                pl.BlockSpec((1, tn), lambda i, j, k: (0, j)),    # bias tile
            ],
            out_specs=pl.BlockSpec((tm, tn), lambda i, j, k: (i, j)),
            scratch_shapes=[pltpu.VMEM((tm, tn), jnp.float32)],
        ),
        compiler_params=pltpu.CompilerParams(
            dimension_semantics=("parallel", "parallel", "arbitrary"),
        ),
        cost_estimate=cost,
    )(x_p, w_p, b_p)

    # Slice back to exact PyTorch semantics.
    return out_padded[:batch, :out_features]


if __name__ == "__main__":
    # Small shapes consistent with the module's in_features / out_features kwargs.
    batch = 8
    in_features = 32
    out_features = 16

    key = jax.random.PRNGKey(0)
    kx, kw, kb = jax.random.split(key, 3)

    x = jax.random.normal(kx, (batch, in_features), dtype=jnp.float32)
    # Deterministic parameter init (PyTorch Linear default-ish uniform scale).
    bound = 1.0 / (in_features ** 0.5)
    weight = jax.random.uniform(
        kw, (out_features, in_features), minval=-bound, maxval=bound, dtype=jnp.float32
    )
    bias = jax.random.uniform(
        kb, (out_features,), minval=-bound, maxval=bound, dtype=jnp.float32
    )

    out = neural_network_forward(x, weight, bias)
    out = jax.block_until_ready(out)

    # Reference: bf16 operands (matching the kernel's MXU dtype), f32 accumulate.
    ref_bf16 = (
        x.astype(jnp.bfloat16).astype(jnp.float32)
        @ weight.astype(jnp.bfloat16).astype(jnp.float32).T
        + bias
    )
    ref_f32 = x @ weight.T + bias

    assert out.shape == (batch, out_features)
    assert jnp.allclose(out, ref_bf16, atol=1e-5, rtol=1e-5)
    assert jnp.allclose(out, ref_f32, atol=2e-2, rtol=2e-2)

    print("KERNEL_OK")
</pallas_src>

<mosaic_0001>
module attributes {stable_mosaic.version = 11 : i64} {
  func.func @_linear_kernel(%arg0: i32, %arg1: i32, %arg2: i32, %arg3: memref<8x128xbf16, #tpu.memory_space<vmem>>, %arg4: memref<128x128xbf16, #tpu.memory_space<vmem>>, %arg5: memref<1x128xf32, #tpu.memory_space<vmem>>, %arg6: memref<8x128xf32, #tpu.memory_space<vmem>>, %arg7: memref<8x128xf32, #tpu.memory_space<vmem>>) attributes {dimension_semantics = [#tpu.dimension_semantics<parallel>, #tpu.dimension_semantics<parallel>, #tpu.dimension_semantics<arbitrary>], iteration_bounds = array<i64: 1, 1, 1>, scalar_prefetch = 0 : i64, scratch_operands = 1 : i64, tpu.core_type = #tpu.core_type<tc>, window_params = [{transform_indices = @transform_0, window_bounds = array<i64: 8, 128>}, {transform_indices = @transform_1, window_bounds = array<i64: 128, 128>}, {transform_indices = @transform_2, window_bounds = array<i64: 1, 128>}, {transform_indices = @transform_3, window_bounds = array<i64: 8, 128>}]} {
    %c0_i32 = arith.constant 0 : i32
    %0 = arith.cmpi eq, %arg2, %c0_i32 : i32
    %1 = arith.extui %0 : i1 to i32
    %c0_i32_0 = arith.constant 0 : i32
    %2 = arith.cmpi ne, %1, %c0_i32_0 : i32
    scf.if %2 {
      %cst_10 = arith.constant 0.000000e+00 : f32
      %12 = vector.broadcast %cst_10 : f32 to vector<8x128xf32>
      %c0_11 = arith.constant 0 : index
      %c0_12 = arith.constant 0 : index
      %13 = vector.load %arg7[%c0_11, %c0_12] : memref<8x128xf32, #tpu.memory_space<vmem>>, vector<8x128xf32>
      tpu.vector_store %arg7[%c0_11, %c0_12], %12 {strides = array<i32>} : memref<8x128xf32, #tpu.memory_space<vmem>>, vector<8x128xf32>,
    } else {
    }
    %c0 = arith.constant 0 : index
    %c0_1 = arith.constant 0 : index
    %3 = vector.load %arg7[%c0, %c0_1] : memref<8x128xf32, #tpu.memory_space<vmem>>, vector<8x128xf32>
    %c0_2 = arith.constant 0 : index
    %c0_3 = arith.constant 0 : index
    %4 = vector.load %arg3[%c0_2, %c0_3] : memref<8x128xbf16, #tpu.memory_space<vmem>>, vector<8x128xbf16>
    %c0_4 = arith.constant 0 : index
    %c0_5 = arith.constant 0 : index
    %5 = vector.load %arg4[%c0_4, %c0_5] : memref<128x128xbf16, #tpu.memory_space<vmem>>, vector<128x128xbf16>
    %cst = arith.constant dense<0.000000e+00> : vector<8x128xf32>
    %6 = tpu.matmul %4, %5, %cst {dimension_numbers = #tpu.dot_dimension_numbers<[1], [0], [0], [1], [0, 0, 1, 1], [], []>} : vector<8x128xbf16>, vector<128x128xbf16>, vector<8x128xf32> -> vector<8x128xf32>
    %7 = arith.addf %3, %6 : vector<8x128xf32>
    %c0_6 = arith.constant 0 : index
    %c0_7 = arith.constant 0 : index
    %8 = vector.load %arg7[%c0_6, %c0_7] : memref<8x128xf32, #tpu.memory_space<vmem>>, vector<8x128xf32>
    tpu.vector_store %arg7[%c0_6, %c0_7], %7 {strides = array<i32>} : memref<8x128xf32, #tpu.memory_space<vmem>>, vector<8x128xf32>,
    %c0_i32_8 = arith.constant 0 : i32
    %9 = arith.cmpi eq, %arg2, %c0_i32_8 : i32
    %10 = arith.extui %9 : i1 to i32
    %c0_i32_9 = arith.constant 0 : i32
    %11 = arith.cmpi ne, %10, %c0_i32_9 : i32
    scf.if %11 {
      %c0_10 = arith.constant 0 : index
      %c0_11 = arith.constant 0 : index
      %12 = vector.load %arg7[%c0_10, %c0_11] : memref<8x128xf32, #tpu.memory_space<vmem>>, vector<8x128xf32>
      %c0_12 = arith.constant 0 : index
      %c0_13 = arith.constant 0 : index
      %13 = vector.load %arg5[%c0_12, %c0_13] : memref<1x128xf32, #tpu.memory_space<vmem>>, vector<1x128xf32>
      %14 = vector.broadcast %13 : vector<1x128xf32> to vector<8x128xf32>
      %15 = arith.addf %12, %14 : vector<8x128xf32>
      %c0_14 = arith.constant 0 : index
      %c0_15 = arith.constant 0 : index
      %16 = vector.load %arg6[%c0_14, %c0_15] : memref<8x128xf32, #tpu.memory_space<vmem>>, vector<8x128xf32>
      tpu.vector_store %arg6[%c0_14, %c0_15], %15 {strides = array<i32>} : memref<8x128xf32, #tpu.memory_space<vmem>>, vector<8x128xf32>,
    } else {
    }
    return
  }
  func.func @transform_0(%arg0: i32, %arg1: i32, %arg2: i32) -> (i32, i32) {
    %c0_i32 = arith.constant 0 : i32
    return %arg0, %arg2 : i32, i32
  }
  func.func @transform_1(%arg0: i32, %arg1: i32, %arg2: i32) -> (i32, i32) {
    %c0_i32 = arith.constant 0 : i32
    return %arg2, %arg1 : i32, i32
  }
  func.func @transform_2(%arg0: i32, %arg1: i32, %arg2: i32) -> (i32, i32) {
    %c0_i32 = arith.constant 0 : i32
    %c0_i32_0 = arith.constant 0 : i32
    return %c0_i32, %arg1 : i32, i32
  }
  func.func @transform_3(%arg0: i32, %arg1: i32, %arg2: i32) -> (i32, i32) {
    %c0_i32 = arith.constant 0 : i32
    return %arg0, %arg1 : i32, i32
  }
}

</mosaic_0001>

<llo_original>
// kernel: neural_network_forward.1
$region0: #{neural_network_forward.1}
  #allocation0 [shape = 'u32[]', space=smem, size = 0x4, offset = 0x4, fixed_abs, tag = 'smem constant byte address 0x4 - core index']
  #allocation1 [shape = 'u32[144,128]{1,0:T(1,128)}', space=vmem, size = 0x12000, scoped, tag = 'internal scratch']
  #allocation2 [shape = 'f32[8,128]{1,0:T(8,128)}', space=vmem, size = 0x1000, scoped, tag = 'scratch operand']
  %s0 = inlined_call_operand.vmem [shape: bf16[8,128], index: 0, kind: input, shape index: {}]
  %s1 = inlined_call_operand.vmem [shape: bf16[128,128], index: 1, kind: input, shape index: {}]
  %s2 = inlined_call_operand.vmem [shape: f32[1,128], index: 2, kind: input, shape index: {}]
  %s3 = inlined_call_operand.hbm [shape: f32[8,128], index: 3, kind: output, shape index: {}]
  %s4 = sld [smem:[#allocation0]]
  $region30: #{neural_network_forward.1} parent=0
    _
  %s6 = ssub.s32 1, %s4
  %s7 = scalar_select 0, %s6, %s4
  $region1: #{neural_network_forward.1} parent=0
    #allocation3 [shape = 'u8[4096]{0}', space=vmem, size = 0x1000, scoped, tag = 'output window, operand 0, single buffered']
    #allocation4 [shape = 's32[1]{0}', space=sflag, size = 0x4, scoped, tag = 'scoped memory for neural_network_forward.1']
    %8 = vsyncpa [#allocation4], 0
    // Predicated region
    $region2: #{neural_network_forward.1} parent=1 // pred_check
      _
    $region3: #{neural_network_forward.1} parent=1 // pred_check_branch
      %10 = sbr.rel (0) target = $region5
    $region4: #{neural_network_forward.1} parent=1 // pred_region
      _
    $region5: #{neural_network_forward.1} parent=1 // pred_fallthru
      _
    // Predicated region
    $region6: #{neural_network_forward.1} parent=1 // pred_check
      _
    $region7: #{neural_network_forward.1} parent=1 // pred_check_branch
      %12 = sbr.rel (0) target = $region9
    $region8: #{neural_network_forward.1} parent=1 // pred_region
      _
    $region9: #{neural_network_forward.1} parent=1 // pred_fallthru
      _
    // Predicated region
    $region10: #{neural_network_forward.1} parent=1 // pred_check
      _
    $region11: #{neural_network_forward.1} parent=1 // pred_check_branch
      %14 = sbr.rel (0) target = $region13
    $region12: #{neural_network_forward.1} parent=1 // pred_region
      _
    $region13: #{neural_network_forward.1} parent=1 // pred_fallthru
      _
    %p16 = scmp.eq.s32.totalorder 0, 0
    // Predicated region
    $region14: #{neural_network_forward.1} parent=1 // pred_check
      %p17 = pneg %p16
    $region15: #{neural_network_forward.1} parent=1 // pred_check_branch
      %19 = sbr.rel (%p17) target = $region17
    $region16: #{neural_network_forward.1} parent=1 // pred_region
      %20 = vst [vmem:[#allocation2] sm:$0xff] 0.0
    $region17: #{neural_network_forward.1} parent=1 // pred_fallthru
      _
    %v21 = vld [vmem:[#allocation2] sm:$0xff]
    %v22 = vld [vmem:[%s0] sm:$0xf]
    %v23 = vld [vmem:[%s1] sm:$0xf]
    %v24 = vld [vmem:[%s1 + $0x4] sm:$0xf]
    %v25 = vld [vmem:[%s1 + $0x8] sm:$0xf]
    %v26 = vld [vmem:[%s1 + $0xc] sm:$0xf]
    %v27 = vld [vmem:[%s1 + $0x10] sm:$0xf]
    %v28 = vld [vmem:[%s1 + $0x14] sm:$0xf]
    %v29 = vld [vmem:[%s1 + $0x18] sm:$0xf]
    %v30 = vld [vmem:[%s1 + $0x1c] sm:$0xf]
    %v31 = vld [vmem:[%s1 + $0x20] sm:$0xf]
    %v32 = vld [vmem:[%s1 + $0x24] sm:$0xf]
    %v33 = vld [vmem:[%s1 + $0x28] sm:$0xf]
    %v34 = vld [vmem:[%s1 + $0x2c] sm:$0xf]
    %v35 = vld [vmem:[%s1 + $0x30] sm:$0xf]
    %v36 = vld [vmem:[%s1 + $0x34] sm:$0xf]
    %v37 = vld [vmem:[%s1 + $0x38] sm:$0xf]
    %v38 = vld [vmem:[%s1 + $0x3c] sm:$0xf]
    %v55 = vunpack.c.l.b16 %v23
    %v56 = vunpack.c.l.b16 %v24
    %v57 = vunpack.c.l.b16 %v25
    %v58 = vunpack.c.l.b16 %v26
    %v59 = vunpack.c.l.b16 %v27
    %v60 = vunpack.c.l.b16 %v28
    %v61 = vunpack.c.l.b16 %v29
    %v62 = vunpack.c.l.b16 %v30
    %v63 = vunpack.c.l.b16 %v31
    %v64 = vunpack.c.l.b16 %v32
    %v65 = vunpack.c.l.b16 %v33
    %v66 = vunpack.c.l.b16 %v34
    %v67 = vunpack.c.l.b16 %v35
    %v68 = vunpack.c.l.b16 %v36
    %v69 = vunpack.c.l.b16 %v37
    %v70 = vunpack.c.l.b16 %v38
    %v71 = vpack.c.b16 %v56, %v55
    %v72 = vpack.c.b16 %v58, %v57
    %v73 = vpack.c.b16 %v60, %v59
    %v74 = vpack.c.b16 %v62, %v61
    %v75 = vpack.c.b16 %v64, %v63
    %v76 = vpack.c.b16 %v66, %v65
    %v77 = vpack.c.b16 %v68, %v67
    %v78 = vpack.c.b16 %v70, %v69
    %87 = vmatprep.subr.bf16.mxu0 0
    %88 = vmatpush1.bf16.msra.mxu0 %v71
    %89 = vmatprep.subr.bf16.mxu0 0
    %90 = vmatpush1.bf16.msra.mxu0 %v72
    %91 = vmatprep.subr.bf16.mxu0 0
    %92 = vmatpush1.bf16.msra.mxu0 %v73
    %93 = vmatprep.subr.bf16.mxu0 0
    %94 = vmatpush1.bf16.msra.mxu0 %v74
    %95 = vmatprep.subr.bf16.mxu0 0
    %96 = vmatpush1.bf16.msra.mxu0 %v75
    %97 = vmatprep.subr.bf16.mxu0 0
    %98 = vmatpush1.bf16.msra.mxu0 %v76
    %99 = vmatprep.subr.bf16.mxu0 0
    %100 = vmatpush1.bf16.msra.mxu0 %v77
    %101 = vmatprep.subr.bf16.mxu0 0
    %102 = vmatpush1.bf16.msra.mxu0 %v78
    %103 = vmatprep.subr.bf16.mxu0 0
    %104 = vmatpush1.bf16.msra.mxu0 0
    %105 = vmatprep.subr.bf16.mxu0 0
    %106 = vmatpush1.bf16.msra.mxu0 0
    %107 = vmatprep.subr.bf16.mxu0 0
    %108 = vmatpush1.bf16.msra.mxu0 0
    %109 = vmatprep.subr.bf16.mxu0 0
    %110 = vmatpush1.bf16.msra.mxu0 0
    %111 = vmatprep.subr.bf16.mxu0 0
    %112 = vmatpush1.bf16.msra.mxu0 0
    %113 = vmatprep.subr.bf16.mxu0 0
    %114 = vmatpush1.bf16.msra.mxu0 0
    %115 = vmatprep.subr.bf16.mxu0 0
    %116 = vmatpush1.bf16.msra.mxu0 0
    %117 = vmatprep.subr.bf16.mxu0 0
    %118 = vmatpush1.bf16.msra.mxu0 0
    %119 = vmatprep.mubr.bf16.mxu0 0
    %120 = vmatmul.mubr.bf16.gmra.mrb[0].mxu0 %v22
    %v121 = vpop.f32.mrb[0].mxu0
    %v122 = vadd.f32 0.0, %v121
    %v123 = vpop.f32.mrb[0].mxu0
    %v124 = vpop.f32.mrb[0].mxu0
    %v125 = vpop.f32.mrb[0].mxu0
    %126 = vdwg.mxu0
    %v127 = vadd.f32 %v21, %v122
    %128 = vst [vmem:[#allocation2] sm:$0xff] %v127
    // Predicated region
    $region18: #{neural_network_forward.1} parent=1 // pred_check
      %p129 = pneg %p16
    $region19: #{neural_network_forward.1} parent=1 // pred_check_branch
      %131 = sbr.rel (%p129) target = $region21
    $region20: #{neural_network_forward.1} parent=1 // pred_region
      %v132 = vld [vmem:[#allocation2] sm:$0xff]
      %v133 = vld [vmem:[%s2] sm:$0x1]
      %v135 = vlaneseq
      %v136 = vshrl.u32 %v135, 7
      %v137 = vsub.s32 0, %v136
      %v138 = vrot.slane %v133, %v137
      %v140 = vadd.f32 %v132, %v138
      %141 = vst [vmem:[#allocation3] sm:$0xff] %v140
    $region21: #{neural_network_forward.1} parent=1 // pred_fallthru
      _
    // Predicated region
    $region22: #{neural_network_forward.1} parent=1 // pred_check
      _
    $region23: #{neural_network_forward.1} parent=1 // pred_check_branch
      %143 = sbr.rel (0) target = $region25
    $region24: #{neural_network_forward.1} parent=1 // pred_region
      %s145 = ssub.s32 128, 128
      %146 = vsyncadd [#allocation4], %s145
      %s148 = sshll.u32 [#allocation3], 4
      %s149 = int_to_ptr.vmem [resolvable:$true] %s148
      %151 = dma.vmem_to_hbm [thread:$0]  %s149, 128, %s3, [#allocation4]
    $region25: #{neural_network_forward.1} parent=1 // pred_fallthru
      _
    // Predicated region
    $region26: #{neural_network_forward.1} parent=1 // pred_check
      _
    $region27: #{neural_network_forward.1} parent=1 // pred_check_branch
      %153 = sbr.rel (0) target = $region29
    $region28: #{neural_network_forward.1} parent=1 // pred_region
      %154 = dma.done [#allocation4], 128
    $region29: #{neural_network_forward.1} parent=1 // pred_fallthru
      _
    %155 = vsyncpa [#allocation4], 1

</llo_original>
